<compile_context>
chip_gen: v6e
topology: v6e:2x2x1
jax: 0.10.0
libtpu: 0.0.40
codegen_flags: <defaults>
</compile_context>

<pallas_src>
import math
import functools

import jax
import jax.numpy as jnp
from jax.experimental import pallas as pl
from jax.experimental.pallas import tpu as pltpu


# ---------------------------------------------------------------------------
# Kernels (pure jnp ops -> lower both on TPU and in interpret mode).
# ---------------------------------------------------------------------------

def _add_pe_kernel(x_ref, pe_ref, o_ref):
    # x_ref: (R, C) tile; pe_ref: (R, C) or (1, C) tile (broadcasts over rows).
    y = x_ref[...].astype(jnp.float32) + pe_ref[...].astype(jnp.float32)
    o_ref[...] = y.astype(o_ref.dtype)


def _add_pe_dropout_kernel(x_ref, pe_ref, bits_ref, o_ref, *, threshold, scale):
    y = x_ref[...].astype(jnp.float32) + pe_ref[...].astype(jnp.float32)
    # Integer-threshold dropout: drop iff bits < threshold, P = threshold / 2^32.
    keep = bits_ref[...] >= jnp.uint32(threshold)
    o_ref[...] = jnp.where(keep, y * jnp.float32(scale),
                           jnp.float32(0.0)).astype(o_ref.dtype)


# ---------------------------------------------------------------------------
# Positional-embedding table (identical math to the PyTorch __init__).
# ---------------------------------------------------------------------------

def make_pos_embedding(feature_size: int, max_length: int) -> jnp.ndarray:
    den = jnp.exp(
        -jnp.arange(0, feature_size, 2, dtype=jnp.float32)
        * (math.log(10000.0) / feature_size)
    )                                                          # (F/2,)
    pos = jnp.arange(0, max_length, dtype=jnp.float32)[:, None]  # (L, 1)
    angles = pos * den[None, :]                                # (L, F/2)
    pe = jnp.zeros((max_length, feature_size), dtype=jnp.float32)
    pe = pe.at[:, 0::2].set(jnp.sin(angles))
    pe = pe.at[:, 1::2].set(jnp.cos(angles))
    return pe                                                  # (L, F)


# ---------------------------------------------------------------------------
# Wrapper: tiling choice + pallas_call.
# ---------------------------------------------------------------------------

_TARGET_BLOCK_ELEMS = 512 * 1024   # ~2 MiB of f32 per block


def _pick_tile(total: int, align: int, max_elems: int) -> int:
    """Largest t <= max_elems with t % align == 0 and t | total.
    Falls back to `total` (a full-extent block is always layout-legal)."""
    if total <= max_elems:
        return total
    best = None
    t = align
    limit = min(total, max_elems)
    while t <= limit:
        if total % t == 0:
            best = t
        t += align
    return best if best is not None else total


def positional_encoding(features: jnp.ndarray,
                        pos_embedding: jnp.ndarray,
                        *,
                        dropout_p: float = 0.0,
                        rng_key=None,
                        training: bool = True) -> jnp.ndarray:
    """features: (B, S, F).  pos_embedding: (max_length, >=F).  Returns (B, S, F)."""
    B, S, F = features.shape
    pe = pos_embedding[:S, :F].astype(jnp.float32)
    p = float(dropout_p) if training else 0.0
    if p >= 1.0:
        return jnp.zeros_like(features)
    use_dropout = p > 0.0
    if use_dropout and rng_key is None:
        raise ValueError("rng_key is required when dropout is active")

    # ---- choose a lane-dense 2D view + tiling -------------------------------
    if F % 128 == 0 and S % 8 == 0:
        # View as (B*S, F); pe indexed by the sequence tile so only a (TR, F)
        # slice of the table is resident in VMEM.
        x2 = features.reshape(B * S, F)
        pe2 = pe                                                 # (S, F)
        tr = _pick_tile(S, 8, max(8, _TARGET_BLOCK_ELEMS // F))
        s_blocks = S // tr
        grid = ((B * S) // tr,)

        def x_map(i):
            return (i, 0)

        def pe_map(i):
            return (i % s_blocks, 0)

        x_spec = pl.BlockSpec((tr, F), x_map)
        pe_spec = pl.BlockSpec((tr, F), pe_map)
        out_spec = pl.BlockSpec((tr, F), x_map)
        dims = ("parallel",)
    else:
        # View as (B, S*F): each batch element's (seq, feature) plane becomes
        # one lane-dense row; pe broadcasts across rows inside the kernel.
        x2 = features.reshape(B, S * F)
        pe2 = pe.reshape(1, S * F)
        tb = 8 if B % 8 == 0 else B
        tc = _pick_tile(S * F, 128, max(128, _TARGET_BLOCK_ELEMS // tb))
        grid = (B // tb, (S * F) // tc)

        def x_map(i, j):
            return (i, j)

        def pe_map(i, j):
            return (0, j)

        x_spec = pl.BlockSpec((tb, tc), x_map)
        pe_spec = pl.BlockSpec((1, tc), pe_map)
        out_spec = pl.BlockSpec((tb, tc), x_map)
        dims = ("parallel", "parallel")

    in_arrays = [x2, pe2]
    in_specs = [x_spec, pe_spec]

    if use_dropout:
        threshold = min(int(round(p * float(2 ** 32))), 2 ** 32 - 1)
        scale = 1.0 / (1.0 - p)
        bits = jax.random.bits(rng_key, x2.shape, dtype=jnp.uint32)
        in_arrays.append(bits)
        in_specs.append(pl.BlockSpec(x_spec.block_shape, x_spec.index_map))
        kernel = functools.partial(_add_pe_dropout_kernel,
                                   threshold=threshold, scale=scale)
    else:
        kernel = _add_pe_kernel

    out2 = pl.pallas_call(
        kernel,
        out_shape=jax.ShapeDtypeStruct(x2.shape, features.dtype),
        grid=grid,
        in_specs=in_specs,
        out_specs=out_spec,
        compiler_params=pltpu.CompilerParams(dimension_semantics=dims),
    )(*in_arrays)

    return out2.reshape(B, S, F)


# ---------------------------------------------------------------------------
# Demo / self-check.
# ---------------------------------------------------------------------------

if __name__ == "__main__":
    # Small shapes consistent with the module: batch=2, seq=8, feature_size=32.
    B, S, F = 2, 8, 32
    max_length = 64
    dropout = 0.1

    root = jax.random.PRNGKey(0)
    feat_key, drop_key, feat_key2 = jax.random.split(root, 3)
    features = jax.random.normal(feat_key, (B, S, F), dtype=jnp.float32)
    pos_embedding = make_pos_embedding(F, max_length)
    ref = features + pos_embedding[None, :S, :F]

    # Eval mode (dropout off): exact check against the reference.
    out_eval = positional_encoding(features, pos_embedding,
                                   dropout_p=dropout, training=False)
    out_eval = jax.block_until_ready(out_eval)
    assert out_eval.shape == (B, S, F)
    assert jnp.allclose(out_eval, ref, atol=1e-6), "eval-mode mismatch"

    # Training mode (dropout on): every element is either dropped or scaled.
    out_train = positional_encoding(features, pos_embedding,
                                    dropout_p=dropout, rng_key=drop_key,
                                    training=True)
    out_train = jax.block_until_ready(out_train)
    scale = 1.0 / (1.0 - dropout)
    ok = (out_train == 0) | jnp.isclose(out_train, ref * scale, atol=1e-5)
    assert bool(jnp.all(ok)), "training-mode dropout mismatch"

    # Also exercise the lane-dense (B*S, F) path (F a multiple of 128).
    B2, S2, F2 = 2, 16, 128
    feats2 = jax.random.normal(feat_key2, (B2, S2, F2), dtype=jnp.float32)
    pe2 = make_pos_embedding(F2, 32)
    out2 = positional_encoding(feats2, pe2, dropout_p=0.0, training=False)
    out2 = jax.block_until_ready(out2)
    ref2 = feats2 + pe2[None, :S2, :F2]
    assert jnp.allclose(out2, ref2, atol=1e-6), "lane-dense path mismatch"

    print("KERNEL_OK")
</pallas_src>

<mosaic_0001>
module attributes {stable_mosaic.version = 11 : i64} {
  func.func @_add_pe_kernel(%arg0: i32, %arg1: i32, %arg2: memref<2x256xf32, #tpu.memory_space<vmem>>, %arg3: memref<1x256xf32, #tpu.memory_space<vmem>>, %arg4: memref<2x256xf32, #tpu.memory_space<vmem>>) attributes {dimension_semantics = [#tpu.dimension_semantics<parallel>, #tpu.dimension_semantics<parallel>], iteration_bounds = array<i64: 1, 1>, scalar_prefetch = 0 : i64, scratch_operands = 0 : i64, tpu.core_type = #tpu.core_type<tc>, window_params = [{transform_indices = @transform_0, window_bounds = array<i64: 2, 256>}, {transform_indices = @transform_1, window_bounds = array<i64: 1, 256>}, {transform_indices = @transform_2, window_bounds = array<i64: 2, 256>}]} {
    %c0 = arith.constant 0 : index
    %c0_0 = arith.constant 0 : index
    %0 = vector.load %arg2[%c0, %c0_0] : memref<2x256xf32, #tpu.memory_space<vmem>>, vector<2x256xf32>
    %c0_1 = arith.constant 0 : index
    %c0_2 = arith.constant 0 : index
    %1 = vector.load %arg3[%c0_1, %c0_2] : memref<1x256xf32, #tpu.memory_space<vmem>>, vector<1x256xf32>
    %2 = vector.broadcast %1 : vector<1x256xf32> to vector<2x256xf32>
    %3 = arith.addf %0, %2 : vector<2x256xf32>
    %c0_3 = arith.constant 0 : index
    %c0_4 = arith.constant 0 : index
    %4 = vector.load %arg4[%c0_3, %c0_4] : memref<2x256xf32, #tpu.memory_space<vmem>>, vector<2x256xf32>
    tpu.vector_store %arg4[%c0_3, %c0_4], %3 {strides = array<i32>} : memref<2x256xf32, #tpu.memory_space<vmem>>, vector<2x256xf32>,
    return
  }
  func.func @transform_0(%arg0: i32, %arg1: i32) -> (i32, i32) {
    %c0_i32 = arith.constant 0 : i32
    return %arg0, %arg1 : i32, i32
  }
  func.func @transform_1(%arg0: i32, %arg1: i32) -> (i32, i32) {
    %c0_i32 = arith.constant 0 : i32
    %c0_i32_0 = arith.constant 0 : i32
    return %c0_i32, %arg1 : i32, i32
  }
  func.func @transform_2(%arg0: i32, %arg1: i32) -> (i32, i32) {
    %c0_i32 = arith.constant 0 : i32
    return %arg0, %arg1 : i32, i32
  }
}

</mosaic_0001>

<llo_original>
// kernel: tpu_custom_call.1
$region0: #{tpu_custom_call.1}
  #allocation0 [shape = 'u32[]', space=smem, size = 0x4, offset = 0x4, fixed_abs, tag = 'smem constant byte address 0x4 - core index']
  #allocation1 [shape = 'u32[144,128]{1,0:T(1,128)}', space=vmem, size = 0x12000, scoped, tag = 'internal scratch']
  %s0 = inlined_call_operand.hbm [shape: f32[2,256], index: 0, kind: input, shape index: {}]
  %s1 = inlined_call_operand.hbm [shape: f32[1,256], index: 1, kind: input, shape index: {}]
  %s2 = inlined_call_operand.hbm [shape: f32[2,256], index: 2, kind: output, shape index: {}]
  %s3 = sld [smem:[#allocation0]]
  $region26: #{tpu_custom_call.1} parent=0
    _
  %s5 = ssub.s32 1, %s3
  %s6 = scalar_select 0, %s5, %s3
  $region1: #{tpu_custom_call.1} parent=0
    #allocation2 [shape = 'u8[2048]{0}', space=vmem, size = 0x800, scoped, tag = 'input window, operand 0, single buffered']
    #allocation3 [shape = 's32[1]{0}', space=sflag, size = 0x4, scoped, tag = 'scoped memory for tpu_custom_call.1']
    #allocation4 [shape = 's32[1]{0}', space=sflag, size = 0x4, scoped, tag = 'scoped memory for tpu_custom_call.1']
    #allocation5 [shape = 'u8[1024]{0}', space=vmem, size = 0x400, scoped, tag = 'input window, operand 1, single buffered']
    #allocation6 [shape = 's32[1]{0}', space=sflag, size = 0x4, scoped, tag = 'scoped memory for tpu_custom_call.1']
    #allocation7 [shape = 'u8[2048]{0}', space=vmem, size = 0x800, scoped, tag = 'output window, operand 0, single buffered']
    %7 = vsyncpa [#allocation3], 0
    %8 = vsyncpa [#allocation6], 0
    %9 = vsyncpa [#allocation4], 0
    // Predicated region
    $region2: #{tpu_custom_call.1} parent=1 // pred_check
      _
    $region3: #{tpu_custom_call.1} parent=1 // pred_check_branch
      %11 = sbr.rel (0) target = $region5
    $region4: #{tpu_custom_call.1} parent=1 // pred_region
      %s13 = ssub.s32 64, 64
      %14 = vsyncadd [#allocation3], %s13
      %s16 = sshll.u32 [#allocation2], 4
      %s17 = int_to_ptr.vmem [resolvable:$true] %s16
      %19 = dma.hbm_to_vmem [thread:$0]  %s0, 64, %s17, [#allocation3]
    $region5: #{tpu_custom_call.1} parent=1 // pred_fallthru
      _
    // Predicated region
    $region6: #{tpu_custom_call.1} parent=1 // pred_check
      _
    $region7: #{tpu_custom_call.1} parent=1 // pred_check_branch
      %21 = sbr.rel (0) target = $region9
    $region8: #{tpu_custom_call.1} parent=1 // pred_region
      %s23 = ssub.s32 32, 32
      %24 = vsyncadd [#allocation6], %s23
      %s26 = sshll.u32 [#allocation5], 4
      %s27 = int_to_ptr.vmem [resolvable:$true] %s26
      %29 = dma.hbm_to_vmem [thread:$0]  %s1, 32, %s27, [#allocation6]
    $region9: #{tpu_custom_call.1} parent=1 // pred_fallthru
      _
    // Predicated region
    $region10: #{tpu_custom_call.1} parent=1 // pred_check
      _
    $region11: #{tpu_custom_call.1} parent=1 // pred_check_branch
      %31 = sbr.rel (0) target = $region13
    $region12: #{tpu_custom_call.1} parent=1 // pred_region
      %32 = dma.done [#allocation3], 64
    $region13: #{tpu_custom_call.1} parent=1 // pred_fallthru
      _
    // Predicated region
    $region14: #{tpu_custom_call.1} parent=1 // pred_check
      _
    $region15: #{tpu_custom_call.1} parent=1 // pred_check_branch
      %34 = sbr.rel (0) target = $region17
    $region16: #{tpu_custom_call.1} parent=1 // pred_region
      %35 = dma.done [#allocation6], 32
    $region17: #{tpu_custom_call.1} parent=1 // pred_fallthru
      _
    %v36 = vld [vmem:[#allocation2] sm:$0xf]
    %v37 = vld [vmem:[#allocation5] sm:$0x3]
    %v39 = vlaneseq
    %v40 = vshrl.u32 %v39, 7
    %v41 = vsub.s32 0, %v40
    %v42 = vrot.slane %v37, %v41
    %v43 = vlaneseq
    %v44 = vshrl.u32 %v43, 7
    %v45 = vsub.s32 1, %v44
    %v46 = vrot.slane %v37, %v45
    %v47 = vcombine.low %v42, %v46
    %v49 = vunpack.c.l.s4 1983009808
    %v50 = vunpack.c.0.s8 %v49
    %v51 = vlaneseq
    %v52 = vshrl.u32 %v51, 7
    %v53 = vsub.s32 %v50, %v52
    %v54 = vrot.slane %v47, %v53
    %v56 = vadd.f32 %v36, %v54
    %57 = vst [vmem:[#allocation7] sm:$0xf] %v56
    // Predicated region
    $region18: #{tpu_custom_call.1} parent=1 // pred_check
      _
    $region19: #{tpu_custom_call.1} parent=1 // pred_check_branch
      %59 = sbr.rel (0) target = $region21
    $region20: #{tpu_custom_call.1} parent=1 // pred_region
      %s61 = ssub.s32 64, 64
      %62 = vsyncadd [#allocation4], %s61
      %s64 = sshll.u32 [#allocation7], 4
      %s65 = int_to_ptr.vmem [resolvable:$true] %s64
      %67 = dma.vmem_to_hbm [thread:$0]  %s65, 64, %s2, [#allocation4]
    $region21: #{tpu_custom_call.1} parent=1 // pred_fallthru
      _
    // Predicated region
    $region22: #{tpu_custom_call.1} parent=1 // pred_check
      _
    $region23: #{tpu_custom_call.1} parent=1 // pred_check_branch
      %69 = sbr.rel (0) target = $region25
    $region24: #{tpu_custom_call.1} parent=1 // pred_region
      %70 = dma.done [#allocation4], 64
    $region25: #{tpu_custom_call.1} parent=1 // pred_fallthru
      _
    %71 = vsyncpa [#allocation3], 1
    %72 = vsyncpa [#allocation6], 1
    %73 = vsyncpa [#allocation4], 1

</llo_original>
